<compile_context>
chip_gen: v6e
topology: v6e:2x2x1
jax: 0.10.0
libtpu: 0.0.40
codegen_flags: <defaults>
</compile_context>

<pallas_src>
import functools

import jax
import jax.numpy as jnp
import numpy as np
from jax.experimental import pallas as pl
from jax.experimental.pallas import tpu as pltpu


# ----------------------------------------------------------------------------
# Pallas kernel: conv-as-matmul (3x3 taps folded into the contraction) + BN,
# with the whole shortcut path (1x1 conv + BN, or identity add) and the final
# ReLU fused into the same grid step.  Epilogue is f32.
# ----------------------------------------------------------------------------
def _conv_bn_kernel(x_ref, w_ref, scale_ref, bias_ref, *rest,
                    shortcut_mode, apply_relu):
    if shortcut_mode == "conv":
        xs_ref, ws_ref, ss_ref, bs_ref, o_ref = rest
    elif shortcut_mode == "add":
        res_ref, o_ref = rest
    else:
        (o_ref,) = rest

    # [TM, Kp] @ [Kp, Cp] -> f32 accumulation on the MXU.
    y = jnp.dot(x_ref[...], w_ref[...], preferred_element_type=jnp.float32)
    y = y * scale_ref[...] + bias_ref[...]

    if shortcut_mode == "conv":
        # Fused 1x1 shortcut conv + BN (small extra dot, hidden under conv2).
        r = jnp.dot(xs_ref[...], ws_ref[...], preferred_element_type=jnp.float32)
        y = y + (r * ss_ref[...] + bs_ref[...])
    elif shortcut_mode == "add":
        y = y + res_ref[...].astype(jnp.float32)

    if apply_relu:
        y = jnp.maximum(y, 0.0)
    o_ref[...] = y.astype(o_ref.dtype)


# ----------------------------------------------------------------------------
# Tiling helpers (generation aware).
# ----------------------------------------------------------------------------
def _round_up(x, m):
    return (x + m - 1) // m * m


def _vmem_capacity_bytes():
    """Per-core VMEM capacity; falls back to 128 MiB if unavailable."""
    try:
        info = pltpu.get_tpu_info()
        cap = getattr(info, "vmem_capacity_bytes", None)
        if cap:
            return int(cap)
    except Exception:
        pass
    return 128 * 1024 * 1024


def _choose_tm(m, per_row_bytes, fixed_bytes, budget_bytes, tm_max):
    """Largest row tile (multiple of 8) fitting the VMEM budget, with >=2 grid
    steps so the 'parallel' axis can feed both TensorCores on v7x."""
    tm = min(tm_max, _round_up(m, 8))
    if m > 8:
        tm = min(tm, _round_up((m + 1) // 2, 8))
    while tm > 8 and tm * per_row_bytes + fixed_bytes > budget_bytes:
        tm = max(8, (tm // 2 // 8) * 8)
    return max(tm, 8)


def _pad2(a, rows, cols):
    r, c = a.shape
    if r == rows and c == cols:
        return a
    return jnp.pad(a, ((0, rows - r), (0, cols - c)))


# ----------------------------------------------------------------------------
# Fused conv (+BN, +shortcut, +ReLU) wrapper.
# ----------------------------------------------------------------------------
def conv_bn_act(patches, weights, scale, bias, *, shortcut=None, relu=False,
                out_dtype=jnp.float32, compute_dtype=jnp.float32):
    """patches: (M, Kc), weights: (Kc, Cout), scale/bias: (1, Cout).
    shortcut: None
              | ("add",  residual (M, Cout))
              | ("conv", xs (M, Cin), ws (Cin, Cout), ss (1, Cout), bs (1, Cout))
    Returns the PADDED (Mp, Cp) output; caller slices only where needed."""
    M, Kc = patches.shape
    Cout = weights.shape[-1]

    # Lane-dense padding: contraction and output channels to multiples of 128.
    Kp = _round_up(Kc, 128)
    Cp = _round_up(Cout, 128)

    cbytes = np.dtype(compute_dtype).itemsize
    obytes = np.dtype(out_dtype).itemsize

    mode = None if shortcut is None else shortcut[0]

    # Live-VMEM accounting (tiled operands double-buffered by the pipeline).
    per_row = Kp * cbytes * 2 + Cp * obytes * 2
    fixed = Kp * Cp * cbytes * 2 + 2 * Cp * 4 * 2
    Cin_p = 0
    if mode == "conv":
        Cin = shortcut[1].shape[-1]
        Cin_p = _round_up(Cin, 128)
        per_row += Cin_p * cbytes * 2
        fixed += Cin_p * Cp * cbytes * 2 + 2 * Cp * 4 * 2
    elif mode == "add":
        per_row += Cp * cbytes * 2

    cap = _vmem_capacity_bytes()                       # 64 MiB v7x, 128 MiB v5e/v6e
    budget = int(cap * 0.30)                           # ~19 MiB v7x, ~38 MiB v6e
    tm_max = 1024 if cap >= 96 * 1024 * 1024 else 512
    tm = _choose_tm(M, per_row, fixed, budget, tm_max)
    Mp = _round_up(M, tm)

    x = _pad2(patches, Mp, Kp).astype(compute_dtype)
    w = _pad2(weights, Kp, Cp).astype(compute_dtype)
    s = _pad2(scale.astype(jnp.float32), 1, Cp)
    b = _pad2(bias.astype(jnp.float32), 1, Cp)

    args = [x, w, s, b]
    in_specs = [
        pl.BlockSpec((tm, Kp), lambda i: (i, 0)),
        pl.BlockSpec((Kp, Cp), lambda i: (0, 0)),   # grid-invariant
        pl.BlockSpec((1, Cp), lambda i: (0, 0)),
        pl.BlockSpec((1, Cp), lambda i: (0, 0)),
    ]

    if mode == "conv":
        _, xs, ws, ss, bs = shortcut
        args += [
            _pad2(xs, Mp, Cin_p).astype(compute_dtype),
            _pad2(ws, Cin_p, Cp).astype(compute_dtype),
            _pad2(ss.astype(jnp.float32), 1, Cp),
            _pad2(bs.astype(jnp.float32), 1, Cp),
        ]
        in_specs += [
            pl.BlockSpec((tm, Cin_p), lambda i: (i, 0)),
            pl.BlockSpec((Cin_p, Cp), lambda i: (0, 0)),
            pl.BlockSpec((1, Cp), lambda i: (0, 0)),
            pl.BlockSpec((1, Cp), lambda i: (0, 0)),
        ]
    elif mode == "add":
        _, res = shortcut
        args.append(_pad2(res, Mp, Cp).astype(compute_dtype))
        in_specs.append(pl.BlockSpec((tm, Cp), lambda i: (i, 0)))

    kernel = functools.partial(_conv_bn_kernel,
                               shortcut_mode=mode, apply_relu=relu)

    return pl.pallas_call(
        kernel,
        out_shape=jax.ShapeDtypeStruct((Mp, Cp), out_dtype),
        grid=(Mp // tm,),
        in_specs=in_specs,
        out_specs=pl.BlockSpec((tm, Cp), lambda i: (i, 0)),
        compiler_params=pltpu.CompilerParams(
            dimension_semantics=("parallel",),
            vmem_limit_bytes=int(cap * 0.70)),
    )(*args)


# ----------------------------------------------------------------------------
# JAX glue: patch extraction (taps folded into channel dim), BN folding.
# ----------------------------------------------------------------------------
def extract_patches_3x3(x_nhwc, stride):
    """Returns (N*Ho*Wo, 9*C) patches for a 3x3 pad=1 conv (tap-major, then C)."""
    N, H, W, C = x_nhwc.shape
    Ho = (H + 2 - 3) // stride + 1
    Wo = (W + 2 - 3) // stride + 1
    xp = jnp.pad(x_nhwc, ((0, 0), (1, 1), (1, 1), (0, 0)))
    taps = []
    for kh in range(3):
        for kw in range(3):
            win = xp[:, kh:kh + stride * (Ho - 1) + 1:stride,
                        kw:kw + stride * (Wo - 1) + 1:stride, :]
            taps.append(win.reshape(N * Ho * Wo, C))
    return jnp.concatenate(taps, axis=-1), (N, Ho, Wo)


def bn_fold(gamma, beta, mean, var, eps=1e-5):
    scale = gamma / jnp.sqrt(var + eps)
    bias = beta - mean * scale
    return scale[None, :], bias[None, :]


def basic_block_forward(x_nchw, params, stride, compute_dtype=jnp.float32):
    """relu(bn2(conv2(relu(bn1(conv1(x))))) + shortcut(x))."""
    x = jnp.transpose(x_nchw, (0, 2, 3, 1)).astype(jnp.float32)   # NHWC, f32
    N, H, W, in_planes = x.shape
    planes = params["conv1_w"].shape[0]

    # Cast once before patch extraction (halves im2col HBM traffic in bf16 mode).
    xc = x.astype(compute_dtype)

    # --- conv3x3(stride) + bn1 + relu ----------------------------------------
    p1, (_, Ho, Wo) = extract_patches_3x3(xc, stride)
    M = N * Ho * Wo
    w1 = jnp.transpose(params["conv1_w"], (2, 3, 1, 0)).reshape(9 * in_planes, planes)
    s1, b1 = bn_fold(params["bn1_gamma"], params["bn1_beta"],
                     params["bn1_mean"], params["bn1_var"])
    h1 = conv_bn_act(p1, w1, s1, b1, relu=True,
                     out_dtype=compute_dtype, compute_dtype=compute_dtype)

    # Slice only because the (N, Ho, Wo, planes) reshape requires exact extents.
    h1_img = h1[:M, :planes].reshape(N, Ho, Wo, planes)

    # --- conv3x3(1) + bn2 + shortcut + add + relu, all in ONE kernel ----------
    p2, _ = extract_patches_3x3(h1_img, 1)
    w2 = jnp.transpose(params["conv2_w"], (2, 3, 1, 0)).reshape(9 * planes, planes)
    s2, b2 = bn_fold(params["bn2_gamma"], params["bn2_beta"],
                     params["bn2_mean"], params["bn2_var"])

    if stride != 1 or in_planes != planes:
        xs = xc[:, ::stride, ::stride, :].reshape(M, in_planes)
        ws = jnp.transpose(params["sc_w"], (2, 3, 1, 0)).reshape(in_planes, planes)
        ss, bs = bn_fold(params["sc_gamma"], params["sc_beta"],
                         params["sc_mean"], params["sc_var"])
        shortcut = ("conv", xs, ws, ss, bs)
    else:
        shortcut = ("add", xc.reshape(M, in_planes))      # nn.Identity

    out = conv_bn_act(p2, w2, s2, b2, shortcut=shortcut, relu=True,
                      out_dtype=jnp.float32, compute_dtype=compute_dtype)

    out = out[:M, :planes].reshape(N, Ho, Wo, planes)
    return jnp.transpose(out, (0, 3, 1, 2))               # back to NCHW


# ----------------------------------------------------------------------------
# Pure-JAX reference (lax.conv, f32) for validation
# ----------------------------------------------------------------------------
def reference_forward(x_nchw, params, stride):
    def conv(x, w, s, pad):
        return jax.lax.conv_general_dilated(
            x, w, (s, s), [(pad, pad), (pad, pad)],
            dimension_numbers=("NCHW", "OIHW", "NCHW"))

    def bn(x, g, b, m, v, eps=1e-5):
        sc = g / jnp.sqrt(v + eps)
        return x * sc[None, :, None, None] + (b - m * sc)[None, :, None, None]

    h = conv(x_nchw, params["conv1_w"], stride, 1)
    h = jnp.maximum(bn(h, params["bn1_gamma"], params["bn1_beta"],
                       params["bn1_mean"], params["bn1_var"]), 0.0)
    h = conv(h, params["conv2_w"], 1, 1)
    h = bn(h, params["bn2_gamma"], params["bn2_beta"],
           params["bn2_mean"], params["bn2_var"])

    in_planes = x_nchw.shape[1]
    planes = params["conv1_w"].shape[0]
    if stride != 1 or in_planes != planes:
        s = conv(x_nchw, params["sc_w"], stride, 0)
        s = bn(s, params["sc_gamma"], params["sc_beta"],
               params["sc_mean"], params["sc_var"])
    else:
        s = x_nchw
    return jnp.maximum(h + s, 0.0)


# ----------------------------------------------------------------------------
def make_params(key, in_planes, planes):
    ks = jax.random.split(key, 16)
    return {
        "conv1_w": 0.2 * jax.random.normal(ks[0], (planes, in_planes, 3, 3), jnp.float32),
        "bn1_gamma": jax.random.uniform(ks[1], (planes,), jnp.float32, 0.5, 1.5),
        "bn1_beta": 0.1 * jax.random.normal(ks[2], (planes,), jnp.float32),
        "bn1_mean": 0.1 * jax.random.normal(ks[3], (planes,), jnp.float32),
        "bn1_var": jax.random.uniform(ks[4], (planes,), jnp.float32, 0.5, 1.5),
        "conv2_w": 0.2 * jax.random.normal(ks[5], (planes, planes, 3, 3), jnp.float32),
        "bn2_gamma": jax.random.uniform(ks[6], (planes,), jnp.float32, 0.5, 1.5),
        "bn2_beta": 0.1 * jax.random.normal(ks[7], (planes,), jnp.float32),
        "bn2_mean": 0.1 * jax.random.normal(ks[8], (planes,), jnp.float32),
        "bn2_var": jax.random.uniform(ks[9], (planes,), jnp.float32, 0.5, 1.5),
        "sc_w": 0.2 * jax.random.normal(ks[10], (planes, in_planes, 1, 1), jnp.float32),
        "sc_gamma": jax.random.uniform(ks[11], (planes,), jnp.float32, 0.5, 1.5),
        "sc_beta": 0.1 * jax.random.normal(ks[12], (planes,), jnp.float32),
        "sc_mean": 0.1 * jax.random.normal(ks[13], (planes,), jnp.float32),
        "sc_var": jax.random.uniform(ks[14], (planes,), jnp.float32, 0.5, 1.5),
    }


if __name__ == "__main__":
    key = jax.random.PRNGKey(0)
    fwd = jax.jit(basic_block_forward, static_argnums=(2, 3))

    # (name, batch, in_planes, planes, spatial, stride)
    # Exercises BOTH branches: downsample shortcut (conv1x1+BN) and nn.Identity.
    configs = [
        ("downsample", 2, 4, 8, 16, 2),
        ("identity", 2, 8, 8, 16, 1),
    ]

    for name, batch, in_planes, planes, spatial, stride in configs:
        key, kx, kp_ = jax.random.split(key, 3)
        x = jax.random.normal(kx, (batch, in_planes, spatial, spatial), jnp.float32)
        params = make_params(kp_, in_planes, planes)

        ref = jax.block_until_ready(reference_forward(x, params, stride))

        # Default path: f32 MXU operands -> tight check vs f32 reference.
        out = jax.block_until_ready(fwd(x, params, stride, jnp.float32))
        np.testing.assert_allclose(np.asarray(out), np.asarray(ref),
                                   rtol=2e-2, atol=2e-2)
        assert out.shape == (batch, planes, spatial // stride, spatial // stride)

        # bf16 fast path (halved patch/intermediate traffic): loose check,
        # tolerance sized for bf16 operand quantization through two convs.
        out_bf16 = jax.block_until_ready(fwd(x, params, stride, jnp.bfloat16))
        np.testing.assert_allclose(np.asarray(out_bf16), np.asarray(ref),
                                   rtol=1e-1, atol=1e-1)

    print("KERNEL_OK")
</pallas_src>

<mosaic_0001>
module attributes {stable_mosaic.version = 11 : i64} {
  func.func @_conv_bn_kernel(%arg0: i32, %arg1: memref<64x128xf32, #tpu.memory_space<vmem>>, %arg2: memref<128x128xf32, #tpu.memory_space<vmem>>, %arg3: memref<1x128xf32, #tpu.memory_space<vmem>>, %arg4: memref<1x128xf32, #tpu.memory_space<vmem>>, %arg5: memref<64x128xf32, #tpu.memory_space<vmem>>) attributes {dimension_semantics = [#tpu.dimension_semantics<parallel>], iteration_bounds = array<i64: 2>, scalar_prefetch = 0 : i64, scratch_operands = 0 : i64, tpu.core_type = #tpu.core_type<tc>, window_params = [{transform_indices = @transform_0, window_bounds = array<i64: 64, 128>}, {pipeline_mode = #tpu.pipeline_mode<synchronous>, transform_indices = @transform_1, window_bounds = array<i64: 128, 128>}, {pipeline_mode = #tpu.pipeline_mode<synchronous>, transform_indices = @transform_2, window_bounds = array<i64: 1, 128>}, {pipeline_mode = #tpu.pipeline_mode<synchronous>, transform_indices = @transform_3, window_bounds = array<i64: 1, 128>}, {transform_indices = @transform_4, window_bounds = array<i64: 64, 128>}]} {
    %c0 = arith.constant 0 : index
    %c0_0 = arith.constant 0 : index
    %0 = vector.load %arg1[%c0, %c0_0] : memref<64x128xf32, #tpu.memory_space<vmem>>, vector<64x128xf32>
    %c0_1 = arith.constant 0 : index
    %c0_2 = arith.constant 0 : index
    %1 = vector.load %arg2[%c0_1, %c0_2] : memref<128x128xf32, #tpu.memory_space<vmem>>, vector<128x128xf32>
    %cst = arith.constant dense<0.000000e+00> : vector<64x128xf32>
    %2 = tpu.matmul %0, %1, %cst {dimension_numbers = #tpu.dot_dimension_numbers<[1], [0], [0], [1], [0, 0, 1, 1], [], []>} : vector<64x128xf32>, vector<128x128xf32>, vector<64x128xf32> -> vector<64x128xf32>
    %c0_3 = arith.constant 0 : index
    %c0_4 = arith.constant 0 : index
    %3 = vector.load %arg3[%c0_3, %c0_4] : memref<1x128xf32, #tpu.memory_space<vmem>>, vector<1x128xf32>
    %4 = vector.broadcast %3 : vector<1x128xf32> to vector<64x128xf32>
    %5 = arith.mulf %2, %4 : vector<64x128xf32>
    %c0_5 = arith.constant 0 : index
    %c0_6 = arith.constant 0 : index
    %6 = vector.load %arg4[%c0_5, %c0_6] : memref<1x128xf32, #tpu.memory_space<vmem>>, vector<1x128xf32>
    %7 = vector.broadcast %6 : vector<1x128xf32> to vector<64x128xf32>
    %8 = arith.addf %5, %7 : vector<64x128xf32>
    %cst_7 = arith.constant 0.000000e+00 : f32
    %9 = vector.broadcast %cst_7 : f32 to vector<64x128xf32>
    %10 = arith.maximumf %8, %9 : vector<64x128xf32>
    %c0_8 = arith.constant 0 : index
    %c0_9 = arith.constant 0 : index
    %11 = vector.load %arg5[%c0_8, %c0_9] : memref<64x128xf32, #tpu.memory_space<vmem>>, vector<64x128xf32>
    tpu.vector_store %arg5[%c0_8, %c0_9], %10 {strides = array<i32>} : memref<64x128xf32, #tpu.memory_space<vmem>>, vector<64x128xf32>,
    return
  }
  func.func @transform_0(%arg0: i32) -> (i32, i32) {
    %c0_i32 = arith.constant 0 : i32
    %c0_i32_0 = arith.constant 0 : i32
    return %arg0, %c0_i32 : i32, i32
  }
  func.func @transform_1(%arg0: i32) -> (i32, i32) {
    %c0_i32 = arith.constant 0 : i32
    %c0_i32_0 = arith.constant 0 : i32
    %c0_i32_1 = arith.constant 0 : i32
    return %c0_i32, %c0_i32_0 : i32, i32
  }
  func.func @transform_2(%arg0: i32) -> (i32, i32) {
    %c0_i32 = arith.constant 0 : i32
    %c0_i32_0 = arith.constant 0 : i32
    %c0_i32_1 = arith.constant 0 : i32
    return %c0_i32, %c0_i32_0 : i32, i32
  }
  func.func @transform_3(%arg0: i32) -> (i32, i32) {
    %c0_i32 = arith.constant 0 : i32
    %c0_i32_0 = arith.constant 0 : i32
    %c0_i32_1 = arith.constant 0 : i32
    return %c0_i32, %c0_i32_0 : i32, i32
  }
  func.func @transform_4(%arg0: i32) -> (i32, i32) {
    %c0_i32 = arith.constant 0 : i32
    %c0_i32_0 = arith.constant 0 : i32
    return %arg0, %c0_i32 : i32, i32
  }
}

module attributes {stable_mosaic.version = 11 : i64} {
  func.func @_conv_bn_kernel(%arg0: i32, %arg1: memref<64x128xf32, #tpu.memory_space<vmem>>, %arg2: memref<128x128xf32, #tpu.memory_space<vmem>>, %arg3: memref<1x128xf32, #tpu.memory_space<vmem>>, %arg4: memref<1x128xf32, #tpu.memory_space<vmem>>, %arg5: memref<64x128xf32, #tpu.memory_space<vmem>>, %arg6: memref<128x128xf32, #tpu.memory_space<vmem>>, %arg7: memref<1x128xf32, #tpu.memory_space<vmem>>, %arg8: memref<1x128xf32, #tpu.memory_space<vmem>>, %arg9: memref<64x128xf32, #tpu.memory_space<vmem>>) attributes {dimension_semantics = [#tpu.dimension_semantics<parallel>], iteration_bounds = array<i64: 2>, scalar_prefetch = 0 : i64, scratch_operands = 0 : i64, tpu.core_type = #tpu.core_type<tc>, window_params = [{transform_indices = @transform_0, window_bounds = array<i64: 64, 128>}, {pipeline_mode = #tpu.pipeline_mode<synchronous>, transform_indices = @transform_1, window_bounds = array<i64: 128, 128>}, {pipeline_mode = #tpu.pipeline_mode<synchronous>, transform_indices = @transform_2, window_bounds = array<i64: 1, 128>}, {pipeline_mode = #tpu.pipeline_mode<synchronous>, transform_indices = @transform_3, window_bounds = array<i64: 1, 128>}, {transform_indices = @transform_4, window_bounds = array<i64: 64, 128>}, {pipeline_mode = #tpu.pipeline_mode<synchronous>, transform_indices = @transform_5, window_bounds = array<i64: 128, 128>}, {pipeline_mode = #tpu.pipeline_mode<synchronous>, transform_indices = @transform_6, window_bounds = array<i64: 1, 128>}, {pipeline_mode = #tpu.pipeline_mode<synchronous>, transform_indices = @transform_7, window_bounds = array<i64: 1, 128>}, {transform_indices = @transform_8, window_bounds = array<i64: 64, 128>}]} {
    %c0 = arith.constant 0 : index
    %c0_0 = arith.constant 0 : index
    %0 = vector.load %arg1[%c0, %c0_0] : memref<64x128xf32, #tpu.memory_space<vmem>>, vector<64x128xf32>
    %c0_1 = arith.constant 0 : index
    %c0_2 = arith.constant 0 : index
    %1 = vector.load %arg2[%c0_1, %c0_2] : memref<128x128xf32, #tpu.memory_space<vmem>>, vector<128x128xf32>
    %cst = arith.constant dense<0.000000e+00> : vector<64x128xf32>
    %2 = tpu.matmul %0, %1, %cst {dimension_numbers = #tpu.dot_dimension_numbers<[1], [0], [0], [1], [0, 0, 1, 1], [], []>} : vector<64x128xf32>, vector<128x128xf32>, vector<64x128xf32> -> vector<64x128xf32>
    %c0_3 = arith.constant 0 : index
    %c0_4 = arith.constant 0 : index
    %3 = vector.load %arg3[%c0_3, %c0_4] : memref<1x128xf32, #tpu.memory_space<vmem>>, vector<1x128xf32>
    %4 = vector.broadcast %3 : vector<1x128xf32> to vector<64x128xf32>
    %5 = arith.mulf %2, %4 : vector<64x128xf32>
    %c0_5 = arith.constant 0 : index
    %c0_6 = arith.constant 0 : index
    %6 = vector.load %arg4[%c0_5, %c0_6] : memref<1x128xf32, #tpu.memory_space<vmem>>, vector<1x128xf32>
    %7 = vector.broadcast %6 : vector<1x128xf32> to vector<64x128xf32>
    %8 = arith.addf %5, %7 : vector<64x128xf32>
    %c0_7 = arith.constant 0 : index
    %c0_8 = arith.constant 0 : index
    %9 = vector.load %arg5[%c0_7, %c0_8] : memref<64x128xf32, #tpu.memory_space<vmem>>, vector<64x128xf32>
    %c0_9 = arith.constant 0 : index
    %c0_10 = arith.constant 0 : index
    %10 = vector.load %arg6[%c0_9, %c0_10] : memref<128x128xf32, #tpu.memory_space<vmem>>, vector<128x128xf32>
    %cst_11 = arith.constant dense<0.000000e+00> : vector<64x128xf32>
    %11 = tpu.matmul %9, %10, %cst_11 {dimension_numbers = #tpu.dot_dimension_numbers<[1], [0], [0], [1], [0, 0, 1, 1], [], []>} : vector<64x128xf32>, vector<128x128xf32>, vector<64x128xf32> -> vector<64x128xf32>
    %c0_12 = arith.constant 0 : index
    %c0_13 = arith.constant 0 : index
    %12 = vector.load %arg7[%c0_12, %c0_13] : memref<1x128xf32, #tpu.memory_space<vmem>>, vector<1x128xf32>
    %13 = vector.broadcast %12 : vector<1x128xf32> to vector<64x128xf32>
    %14 = arith.mulf %11, %13 : vector<64x128xf32>
    %c0_14 = arith.constant 0 : index
    %c0_15 = arith.constant 0 : index
    %15 = vector.load %arg8[%c0_14, %c0_15] : memref<1x128xf32, #tpu.memory_space<vmem>>, vector<1x128xf32>
    %16 = vector.broadcast %15 : vector<1x128xf32> to vector<64x128xf32>
    %17 = arith.addf %14, %16 : vector<64x128xf32>
    %18 = arith.addf %8, %17 : vector<64x128xf32>
    %cst_16 = arith.constant 0.000000e+00 : f32
    %19 = vector.broadcast %cst_16 : f32 to vector<64x128xf32>
    %20 = arith.maximumf %18, %19 : vector<64x128xf32>
    %c0_17 = arith.constant 0 : index
    %c0_18 = arith.constant 0 : index
    %21 = vector.load %arg9[%c0_17, %c0_18] : memref<64x128xf32, #tpu.memory_space<vmem>>, vector<64x128xf32>
    tpu.vector_store %arg9[%c0_17, %c0_18], %20 {strides = array<i32>} : memref<64x128xf32, #tpu.memory_space<vmem>>, vector<64x128xf32>,
    return
  }
  func.func @transform_0(%arg0: i32) -> (i32, i32) {
    %c0_i32 = arith.constant 0 : i32
    %c0_i32_0 = arith.constant 0 : i32
    return %arg0, %c0_i32 : i32, i32
  }
  func.func @transform_1(%arg0: i32) -> (i32, i32) {
    %c0_i32 = arith.constant 0 : i32
    %c0_i32_0 = arith.constant 0 : i32
    %c0_i32_1 = arith.constant 0 : i32
    return %c0_i32, %c0_i32_0 : i32, i32
  }
  func.func @transform_2(%arg0: i32) -> (i32, i32) {
    %c0_i32 = arith.constant 0 : i32
    %c0_i32_0 = arith.constant 0 : i32
    %c0_i32_1 = arith.constant 0 : i32
    return %c0_i32, %c0_i32_0 : i32, i32
  }
  func.func @transform_3(%arg0: i32) -> (i32, i32) {
    %c0_i32 = arith.constant 0 : i32
    %c0_i32_0 = arith.constant 0 : i32
    %c0_i32_1 = arith.constant 0 : i32
    return %c0_i32, %c0_i32_0 : i32, i32
  }
  func.func @transform_4(%arg0: i32) -> (i32, i32) {
    %c0_i32 = arith.constant 0 : i32
    %c0_i32_0 = arith.constant 0 : i32
    return %arg0, %c0_i32 : i32, i32
  }
  func.func @transform_5(%arg0: i32) -> (i32, i32) {
    %c0_i32 = arith.constant 0 : i32
    %c0_i32_0 = arith.constant 0 : i32
    %c0_i32_1 = arith.constant 0 : i32
    return %c0_i32, %c0_i32_0 : i32, i32
  }
  func.func @transform_6(%arg0: i32) -> (i32, i32) {
    %c0_i32 = arith.constant 0 : i32
    %c0_i32_0 = arith.constant 0 : i32
    %c0_i32_1 = arith.constant 0 : i32
    return %c0_i32, %c0_i32_0 : i32, i32
  }
  func.func @transform_7(%arg0: i32) -> (i32, i32) {
    %c0_i32 = arith.constant 0 : i32
    %c0_i32_0 = arith.constant 0 : i32
    %c0_i32_1 = arith.constant 0 : i32
    return %c0_i32, %c0_i32_0 : i32, i32
  }
  func.func @transform_8(%arg0: i32) -> (i32, i32) {
    %c0_i32 = arith.constant 0 : i32
    %c0_i32_0 = arith.constant 0 : i32
    return %arg0, %c0_i32 : i32, i32
  }
}

</mosaic_0001>

<llo_original>
// kernel: basic_block_forward.2
$region0: #{basic_block_forward.2}
  #allocation0 [shape = 'u32[]', space=smem, size = 0x4, offset = 0x4, fixed_abs, tag = 'smem constant byte address 0x4 - core index']
  #allocation1 [shape = 'u32[144,128]{1,0:T(1,128)}', space=vmem, size = 0x12000, scoped, tag = 'internal scratch']
  %s0 = inlined_call_operand.vmem [shape: f32[128,128], index: 0, kind: input, shape index: {}]
  %s1 = inlined_call_operand.vmem [shape: f32[128,128], index: 1, kind: input, shape index: {}]
  %s2 = inlined_call_operand.vmem [shape: f32[1,128], index: 2, kind: input, shape index: {}]
  %s3 = inlined_call_operand.vmem [shape: f32[1,128], index: 3, kind: input, shape index: {}]
  %s4 = inlined_call_operand.vmem [shape: f32[128,128], index: 4, kind: output, shape index: {}]
  %s5 = sld [smem:[#allocation0]]
  $region49: #{basic_block_forward.2} parent=0
    _
  %s7 = ssub.s32 1, %s5
  %s8 = scalar_select 0, %s7, %s5
  loop: start=0, step=1, limit=4
  $region2: #{basic_block_forward.2} parent=0 // loop_pre_header
    _
  $region3: #{basic_block_forward.2} parent=0 // loop_header
    %s10 = sphi 0, %s14
    %p11 = scmp.ge.s32.totalorder %s10, 4
    %s20 = sphi 0, %s22
    %s23 = sphi 0, %s20
    %s24 = sphi 0, %s23
    %s40 = sphi 0, %s24
    %s44 = sphi 0, %s44
    %s46 = sphi 0, %s44
    %s47 = sphi 0, %s46
    %s61 = sphi 0, %s47
    %s65 = sphi 0, %s65
    %s67 = sphi 0, %s65
    %s68 = sphi 0, %s67
    %s82 = sphi 0, %s68
    %s86 = sphi 0, %s86
    %s88 = sphi 0, %s86
    %s89 = sphi 0, %s88
    %s103 = sphi 0, %s89
    %s109 = sphi 0, %s111
    %s112 = sphi 0, %s109
    %s113 = sphi 0, %s112
    %s129 = sphi 0, %s113
  $region4: #{basic_block_forward.2} parent=0 // loop_header_branch
    %13 = sbr.rel (%p11) target = $region8
  $region5: #{basic_block_forward.2} parent=0 // loop_body
    %s15 = ssub.s32 %s10, 1
    %s16 = ssub.s32 %s10, 2
    %s17 = sadd.s32 %s10, 1
    %s18 = ssub.s32 %s10, %s17
    %p19 = scmp.eq.s32.totalorder %s18, 0
    %s21 = sadd.s32 %s20, 1
    %s22 = scalar_select %p19, %s20, %s21
    %p25 = pneg %p19
    %p26 = scmp.eq.s32.totalorder %s10, 1
    %p27 = por %p25, %p26
    %p28 = scmp.ne.s32.totalorder %s20, %s23
    %p29 = scmp.eq.s32.totalorder %s10, 0
    %p30 = por %p28, %p29
    %p31 = scmp.ne.s32.totalorder %s20, %s23
    %p32 = scmp.eq.s32.totalorder %s15, 1
    %p33 = por %p31, %p32
    %p34 = scmp.ne.s32.totalorder %s23, %s24
    %p35 = scmp.eq.s32.totalorder %s15, 0
    %p36 = por %p34, %p35
    %p37 = scmp.ne.s32.totalorder %s23, %s24
    %p38 = scmp.eq.s32.totalorder %s16, 1
    %p39 = por %p37, %p38
    %p41 = scmp.ne.s32.totalorder %s24, %s40
    %p42 = scmp.eq.s32.totalorder %s16, 0
    %p43 = por %p41, %p42
    %s45 = sadd.s32 %s44, 1
    %p48 = scmp.eq.s32.totalorder %s10, 1
    %p49 = scmp.ne.s32.totalorder %s44, %s46
    %p50 = scmp.eq.s32.totalorder %s10, 0
    %p51 = por %p49, %p50
    %p52 = scmp.ne.s32.totalorder %s44, %s46
    %p53 = scmp.eq.s32.totalorder %s15, 1
    %p54 = por %p52, %p53
    %p55 = scmp.ne.s32.totalorder %s46, %s47
    %p56 = scmp.eq.s32.totalorder %s15, 0
    %p57 = por %p55, %p56
    %p58 = scmp.ne.s32.totalorder %s46, %s47
    %p59 = scmp.eq.s32.totalorder %s16, 1
    %p60 = por %p58, %p59
    %p62 = scmp.ne.s32.totalorder %s47, %s61
    %p63 = scmp.eq.s32.totalorder %s16, 0
    %p64 = por %p62, %p63
    %s66 = sadd.s32 %s65, 1
    %p69 = scmp.eq.s32.totalorder %s10, 1
    %p70 = scmp.ne.s32.totalorder %s65, %s67
    %p71 = scmp.eq.s32.totalorder %s10, 0
    %p72 = por %p70, %p71
    %p73 = scmp.ne.s32.totalorder %s65, %s67
    %p74 = scmp.eq.s32.totalorder %s15, 1
    %p75 = por %p73, %p74
    %p76 = scmp.ne.s32.totalorder %s67, %s68
    %p77 = scmp.eq.s32.totalorder %s15, 0
    %p78 = por %p76, %p77
    %p79 = scmp.ne.s32.totalorder %s67, %s68
    %p80 = scmp.eq.s32.totalorder %s16, 1
    %p81 = por %p79, %p80
    %p83 = scmp.ne.s32.totalorder %s68, %s82
    %p84 = scmp.eq.s32.totalorder %s16, 0
    %p85 = por %p83, %p84
    %s87 = sadd.s32 %s86, 1
    %p90 = scmp.eq.s32.totalorder %s10, 1
    %p91 = scmp.ne.s32.totalorder %s86, %s88
    %p92 = scmp.eq.s32.totalorder %s10, 0
    %p93 = por %p91, %p92
    %p94 = scmp.ne.s32.totalorder %s86, %s88
    %p95 = scmp.eq.s32.totalorder %s15, 1
    %p96 = por %p94, %p95
    %p97 = scmp.ne.s32.totalorder %s88, %s89
    %p98 = scmp.eq.s32.totalorder %s15, 0
    %p99 = por %p97, %p98
    %p100 = scmp.ne.s32.totalorder %s88, %s89
    %p101 = scmp.eq.s32.totalorder %s16, 1
    %p102 = por %p100, %p101
    %p104 = scmp.ne.s32.totalorder %s89, %s103
    %p105 = scmp.eq.s32.totalorder %s16, 0
    %p106 = por %p104, %p105
    %s107 = ssub.s32 %s10, %s17
    %p108 = scmp.eq.s32.totalorder %s107, 0
    %s110 = sadd.s32 %s109, 1
    %s111 = scalar_select %p108, %s109, %s110
    %p114 = pneg %p108
    %p115 = scmp.eq.s32.totalorder %s10, 1
    %p116 = por %p114, %p115
    %p117 = scmp.ne.s32.totalorder %s109, %s112
    %p118 = scmp.eq.s32.totalorder %s10, 0
    %p119 = por %p117, %p118
    %p120 = scmp.ne.s32.totalorder %s109, %s112
    %p121 = scmp.eq.s32.totalorder %s15, 1
    %p122 = por %p120, %p121
    %p123 = scmp.ne.s32.totalorder %s112, %s113
    %p124 = scmp.eq.s32.totalorder %s15, 0
    %p125 = por %p123, %p124
    %p126 = scmp.ne.s32.totalorder %s112, %s113
    %p127 = scmp.eq.s32.totalorder %s16, 1
    %p128 = por %p126, %p127
    %p130 = scmp.ne.s32.totalorder %s113, %s129
    %p131 = scmp.eq.s32.totalorder %s16, 0
    %p132 = por %p130, %p131
    %p133 = scmp.le.s32.totalorder 1, %s10
    %p134 = scmp.lt.s32.totalorder %s10, 3
    %p135 = pnand %p133, %p134
    %p136 = pneg %p135
    // Predicated region
    $region9: #{basic_block_forward.2} parent=5 // pred_check
      _
    $region10: #{basic_block_forward.2} parent=5 // pred_check_branch
      %138 = sbr.rel (%p135) target = $region12
    $region11: #{basic_block_forward.2} parent=5 // pred_region
      %s139 = ssub.s32 %s10, 1
      // Predicated region
      $region13: #{basic_block_forward.2} parent=11 // pred_check
        %p140 = pneg %p57
      $region14: #{basic_block_forward.2} parent=11 // pred_check_branch
        %142 = sbr.rel (%p140) target = $region16
      $region15: #{basic_block_forward.2} parent=11 // pred_region
        _
      $region16: #{basic_block_forward.2} parent=11 // pred_fallthru
        _
      // Predicated region
      $region17: #{basic_block_forward.2} parent=11 // pred_check
        %p143 = pneg %p78
      $region18: #{basic_block_forward.2} parent=11 // pred_check_branch
        %145 = sbr.rel (%p143) target = $region20
      $region19: #{basic_block_forward.2} parent=11 // pred_region
        _
      $region20: #{basic_block_forward.2} parent=11 // pred_fallthru
        _
      // Predicated region
      $region21: #{basic_block_forward.2} parent=11 // pred_check
        %p146 = pneg %p99
      $region22: #{basic_block_forward.2} parent=11 // pred_check_branch
        %148 = sbr.rel (%p146) target = $region24
      $region23: #{basic_block_forward.2} parent=11 // pred_region
        _
      $region24: #{basic_block_forward.2} parent=11 // pred_fallthru
        _
    $region12: #{basic_block_forward.2} parent=5 // pred_fallthru
      _
    %p149 = scmp.lt.s32.totalorder %s10, 2
    // Predicated region
    $region25: #{basic_block_forward.2} parent=5 // pred_check
      %p150 = pneg %p149
    $region26: #{basic_block_forward.2} parent=5 // pred_check_branch
      %152 = sbr.rel (%p150) target = $region28
    $region27: #{basic_block_forward.2} parent=5 // pred_region
      // Predicated region
      $region29: #{basic_block_forward.2} parent=27 // pred_check
        %p153 = pneg %p30
      $region30: #{basic_block_forward.2} parent=27 // pred_check_branch
        %155 = sbr.rel (%p153) target = $region32
      $region31: #{basic_block_forward.2} parent=27 // pred_region
        %s156 = smul.u32 8, %s10
        %p157 = scmp.lt.s32.totalorder %s156, 15
        %s158 = scalar_select %p157, %s156, 15
        %s159 = smul.addr %s158, 8
        %s160 = scalar_lea.vmem %s0, %s159
        %s161 = smul.u32 8, %s10
      $region32: #{basic_block_forward.2} parent=27 // pred_fallthru
        _
    $region28: #{basic_block_forward.2} parent=5 // pred_fallthru
      _
    %p162 = scmp.le.s32.totalorder 1, %s10
    %p163 = scmp.lt.s32.totalorder %s10, 3
    %p164 = pnand %p162, %p163
    %p165 = pneg %p164
    // Predicated region
    $region33: #{basic_block_forward.2} parent=5 // pred_check
      _
    $region34: #{basic_block_forward.2} parent=5 // pred_check_branch
      %167 = sbr.rel (%p164) target = $region36
    $region35: #{basic_block_forward.2} parent=5 // pred_region
      %s168 = ssub.s32 %s10, 1
      %s169 = smul.u32 8, %s15
      %p170 = scmp.lt.s32.totalorder %s169, 15
      %s171 = scalar_select %p170, %s169, 15
      %s172 = smul.addr %s171, 8
      %s173 = scalar_lea.vmem %s0, %s172
      %p174 = pneg %p36
      %p175 = pneg %p33
      %p176 = pneg %p57
      %p177 = pneg %p54
      %p178 = pneg %p78
      %p179 = pneg %p75
      %p180 = pneg %p99
      %p181 = pneg %p96
      %p182 = pneg %p125
      %p183 = pneg %p122
      %s184 = smul.u32 8, %s15
      %p185 = scmp.lt.s32.totalorder %s184, 15
      %s186 = scalar_select %p185, %s184, 15
      %s187 = smul.addr %s186, 8
      %s188 = scalar_lea.vmem %s4, %s187
      %s189 = smul.u32 8, %s15
      %p190 = scmp.lt.s32.totalorder %s189, 15
      %s191 = scalar_select %p190, %s189, 15
      %s192 = smul.addr %s191, 8
      %s193 = scalar_lea.vmem %s0, %s192
      %s194 = smul.u32 8, %s15
      %s195 = smul.u32 8, %s15
      %p196 = scmp.lt.s32.totalorder %s195, 15
      %s197 = scalar_select %p196, %s195, 15
      %s198 = smul.addr %s197, 8
      %s199 = scalar_lea.vmem %s4, %s198
      %s200 = smul.u32 8, %s15
      %v201 = vld [vmem:[%s193] sm:$0xff]
      %v202 = vld [vmem:[%s193 + $0x8] sm:$0xff]
      %v203 = vld [vmem:[%s193 + $0x10] sm:$0xff]
      %v204 = vld [vmem:[%s193 + $0x18] sm:$0xff]
      %v205 = vld [vmem:[%s193 + $0x20] sm:$0xff]
      %v206 = vld [vmem:[%s193 + $0x28] sm:$0xff]
      %v207 = vld [vmem:[%s193 + $0x30] sm:$0xff]
      %v208 = vld [vmem:[%s193 + $0x38] sm:$0xff]
      %v209 = vld [vmem:[%s1] sm:$0xff]
      %v210 = vld [vmem:[%s1 + $0x8] sm:$0xff]
      %v211 = vld [vmem:[%s1 + $0x10] sm:$0xff]
      %v212 = vld [vmem:[%s1 + $0x18] sm:$0xff]
      %v213 = vld [vmem:[%s1 + $0x20] sm:$0xff]
      %v214 = vld [vmem:[%s1 + $0x28] sm:$0xff]
      %v215 = vld [vmem:[%s1 + $0x30] sm:$0xff]
      %v216 = vld [vmem:[%s1 + $0x38] sm:$0xff]
      %v217 = vld [vmem:[%s1 + $0x40] sm:$0xff]
      %v218 = vld [vmem:[%s1 + $0x48] sm:$0xff]
      %v219 = vld [vmem:[%s1 + $0x50] sm:$0xff]
      %v220 = vld [vmem:[%s1 + $0x58] sm:$0xff]
      %v221 = vld [vmem:[%s1 + $0x60] sm:$0xff]
      %v222 = vld [vmem:[%s1 + $0x68] sm:$0xff]
      %v223 = vld [vmem:[%s1 + $0x70] sm:$0xff]
      %v224 = vld [vmem:[%s1 + $0x78] sm:$0xff]
      %225 = vmatprep.subr.mxu0 0.0
      %226 = vmatpush1.msra.mxu0 %v224
      %227 = vmatprep.subr.mxu0 0.0
      %228 = vmatpush1.msra.mxu0 %v223
      %229 = vmatprep.subr.mxu0 0.0
      %230 = vmatpush1.msra.mxu0 %v222
      %231 = vmatprep.subr.mxu0 0.0
      %232 = vmatpush1.msra.mxu0 %v221
      %233 = vmatprep.subr.mxu0 0.0
      %234 = vmatpush1.msra.mxu0 %v220
      %235 = vmatprep.subr.mxu0 0.0
      %236 = vmatpush1.msra.mxu0 %v219
      %237 = vmatprep.subr.mxu0 0.0
      %238 = vmatpush1.msra.mxu0 %v218
      %239 = vmatprep.subr.mxu0 0.0
      %240 = vmatpush1.msra.mxu0 %v217
      %241 = vmatprep.subr.mxu0 0.0
      %242 = vmatpush1.msra.mxu0 %v216
      %243 = vmatprep.subr.mxu0 0.0
      %244 = vmatpush1.msra.mxu0 %v215
      %245 = vmatprep.subr.mxu0 0.0
      %246 = vmatpush1.msra.mxu0 %v214
      %247 = vmatprep.subr.mxu0 0.0
      %248 = vmatpush1.msra.mxu0 %v213
      %249 = vmatprep.subr.mxu0 0.0
      %250 = vmatpush1.msra.mxu0 %v212
      %251 = vmatprep.subr.mxu0 0.0
      %252 = vmatpush1.msra.mxu0 %v211
      %253 = vmatprep.subr.mxu0 0.0
      %254 = vmatpush1.msra.mxu0 %v210
      %255 = vmatprep.subr.mxu0 0.0
      %256 = vmatpush1.msra.mxu0 %v209
      %257 = vmatprep.subr.mxu0 0.0
      %258 = vmatpush2.msra.mxu0 0.0
      %259 = vmatprep.subr.mxu0 0.0
      %260 = vmatpush2.msra.mxu0 0.0
      %261 = vmatprep.subr.mxu0 0.0
      %262 = vmatpush2.msra.mxu0 0.0
      %263 = vmatprep.subr.mxu0 0.0
      %264 = vmatpush2.msra.mxu0 0.0
      %265 = vmatprep.subr.mxu0 0.0
      %266 = vmatpush2.msra.mxu0 0.0
      %267 = vmatprep.subr.mxu0 0.0
      %268 = vmatpush2.msra.mxu0 0.0
      %269 = vmatprep.subr.mxu0 0.0
      %270 = vmatpush2.msra.mxu0 0.0
      %271 = vmatprep.subr.mxu0 0.0
      %272 = vmatpush2.msra.mxu0 0.0
      %273 = vmatprep.subr.mxu0 0.0
      %274 = vmatpush2.msra.mxu0 0.0
      %275 = vmatprep.subr.mxu0 0.0
      %276 = vmatpush2.msra.mxu0 0.0
      %277 = vmatprep.subr.mxu0 0.0
      %278 = vmatpush2.msra.mxu0 0.0
      %279 = vmatprep.subr.mxu0 0.0
      %280 = vmatpush2.msra.mxu0 0.0
      %281 = vmatprep.subr.mxu0 0.0
      %282 = vmatpush2.msra.mxu0 0.0
      %283 = vmatprep.subr.mxu0 0.0
      %284 = vmatpush2.msra.mxu0 0.0
      %285 = vmatprep.subr.mxu0 0.0
      %286 = vmatpush2.msra.mxu0 0.0
      %287 = vmatprep.subr.mxu0 0.0
      %288 = vmatpush2.msra.mxu0 0.0
      %289 = vmatprep.mubr.f32.mxu0 0.0
      %290 = vmatmul.mubr.f32.gmra.mxu0 %v201
      %v291 = vpop.f32.mrf.mxu0
      %v292 = vadd.f32 0.0, %v291
      %v293 = vpop.f32.mrf.mxu0
      %294 = vmatprep.mubr.f32.mxu0 0.0
      %295 = vmatmul.mubr.f32.gmra.mxu0 %v202
      %v296 = vpop.f32.mrf.mxu0
      %v297 = vadd.f32 0.0, %v296
      %v298 = vpop.f32.mrf.mxu0
      %299 = vmatprep.mubr.f32.mxu0 0.0
      %300 = vmatmul.mubr.f32.gmra.mxu0 %v203
      %v301 = vpop.f32.mrf.mxu0
      %v302 = vadd.f32 0.0, %v301
      %v303 = vpop.f32.mrf.mxu0
      %304 = vmatprep.mubr.f32.mxu0 0.0
      %305 = vmatmul.mubr.f32.gmra.mxu0 %v204
      %v306 = vpop.f32.mrf.mxu0
      %v307 = vadd.f32 0.0, %v306
      %v308 = vpop.f32.mrf.mxu0
      %309 = vmatprep.mubr.f32.mxu0 0.0
      %310 = vmatmul.mubr.f32.gmra.mxu0 %v205
      %v311 = vpop.f32.mrf.mxu0
      %v312 = vadd.f32 0.0, %v311
      %v313 = vpop.f32.mrf.mxu0
      %314 = vmatprep.mubr.f32.mxu0 0.0
      %315 = vmatmul.mubr.f32.gmra.mxu0 %v206
      %v316 = vpop.f32.mrf.mxu0
      %v317 = vadd.f32 0.0, %v316
      %v318 = vpop.f32.mrf.mxu0
      %319 = vmatprep.mubr.f32.mxu0 0.0
      %320 = vmatmul.mubr.f32.gmra.mxu0 %v207
      %v321 = vpop.f32.mrf.mxu0
      %v322 = vadd.f32 0.0, %v321
      %v323 = vpop.f32.mrf.mxu0
      %324 = vmatprep.mubr.f32.mxu0 0.0
      %325 = vmatmul.mubr.f32.gmra.mxu0 %v208
      %v326 = vpop.f32.mrf.mxu0
      %v327 = vadd.f32 0.0, %v326
      %v328 = vpop.f32.mrf.mxu0
      %329 = vdwg.mxu0
      %v330 = vld [vmem:[%s2] sm:$0x1]
      %v332 = vlaneseq
      %v333 = vshrl.u32 %v332, 7
      %v334 = vsub.s32 0, %v333
      %v335 = vrot.slane %v330, %v334
      %v337 = vmul.f32 %v292, %v335
      %v338 = vmul.f32 %v297, %v335
      %v339 = vmul.f32 %v302, %v335
      %v340 = vmul.f32 %v307, %v335
      %v341 = vmul.f32 %v312, %v335
      %v342 = vmul.f32 %v317, %v335
      %v343 = vmul.f32 %v322, %v335
      %v344 = vmul.f32 %v327, %v335
      %v345 = vld [vmem:[%s3] sm:$0x1]
      %v347 = vlaneseq
      %v348 = vshrl.u32 %v347, 7
      %v349 = vsub.s32 0, %v348
      %v350 = vrot.slane %v345, %v349
      %v352 = vadd.f32 %v337, %v350
      %v353 = vadd.f32 %v338, %v350
      %v354 = vadd.f32 %v339, %v350
      %v355 = vadd.f32 %v340, %v350
      %v356 = vadd.f32 %v341, %v350
      %v357 = vadd.f32 %v342, %v350
      %v358 = vadd.f32 %v343, %v350
      %v359 = vadd.f32 %v344, %v350
      %v360 = vmax.f32 %v352, 0.0
      %v361 = vmax.f32 %v353, 0.0
      %v362 = vmax.f32 %v354, 0.0
      %v363 = vmax.f32 %v355, 0.0
      %v364 = vmax.f32 %v356, 0.0
      %v365 = vmax.f32 %v357, 0.0
      %v366 = vmax.f32 %v358, 0.0
      %v367 = vmax.f32 %v359, 0.0
      %368 = vst [vmem:[%s199] sm:$0xff] %v360
      %369 = vst [vmem:[%s199 + $0x8] sm:$0xff] %v361
      %370 = vst [vmem:[%s199 + $0x10] sm:$0xff] %v362
      %371 = vst [vmem:[%s199 + $0x18] sm:$0xff] %v363
      %372 = vst [vmem:[%s199 + $0x20] sm:$0xff] %v364
      %373 = vst [vmem:[%s199 + $0x28] sm:$0xff] %v365
      %374 = vst [vmem:[%s199 + $0x30] sm:$0xff] %v366
      %375 = vst [vmem:[%s199 + $0x38] sm:$0xff] %v367
      %s376 = smul.u32 8, %s15
      %p377 = scmp.lt.s32.totalorder %s376, 15
      %s378 = scalar_select %p377, %s376, 15
      %s379 = smul.addr %s378, 8
      %s380 = scalar_lea.vmem %s4, %s379
      // Predicated region
      $region37: #{basic_block_forward.2} parent=35 // pred_check
        %p381 = pneg %p122
      $region38: #{basic_block_forward.2} parent=35 // pred_check_branch
        %383 = sbr.rel (%p381) target = $region40
      $region39: #{basic_block_forward.2} parent=35 // pred_region
        %s384 = smul.u32 8, %s15
      $region40: #{basic_block_forward.2} parent=35 // pred_fallthru
        _
    $region36: #{basic_block_forward.2} parent=5 // pred_fallthru
      _
    %p385 = scmp.le.s32.totalorder 2, %s10
    // Predicated region
    $region41: #{basic_block_forward.2} parent=5 // pred_check
      %p386 = pneg %p385
    $region42: #{basic_block_forward.2} parent=5 // pred_check_branch
      %388 = sbr.rel (%p386) target = $region44
    $region43: #{basic_block_forward.2} parent=5 // pred_region
      %s389 = ssub.s32 %s10, 2
      // Predicated region
      $region45: #{basic_block_forward.2} parent=43 // pred_check
        %p390 = pneg %p128
      $region46: #{basic_block_forward.2} parent=43 // pred_check_branch
        %392 = sbr.rel (%p390) target = $region48
      $region47: #{basic_block_forward.2} parent=43 // pred_region
        %s393 = smul.u32 8, %s16
        %p394 = scmp.lt.s32.totalorder %s393, 15
        %s395 = scalar_select %p394, %s393, 15
        %s396 = smul.addr %s395, 8
        %s397 = scalar_lea.vmem %s4, %s396
      $region48: #{basic_block_forward.2} parent=43 // pred_fallthru
        _
    $region44: #{basic_block_forward.2} parent=5 // pred_fallthru
      _
  $region6: #{basic_block_forward.2} parent=0 // loop_footer
    %s14 = sadd.s32 1, %s10
  $region7: #{basic_block_forward.2} parent=0 // loop_footer_branch
    %9 = sbr.rel target = $region3
  $region8: #{basic_block_forward.2} parent=0 // loop_exit
    _

// kernel: basic_block_forward.3
$region0: #{basic_block_forward.3}
  #allocation0 [shape = 'u32[]', space=smem, size = 0x4, offset = 0x4, fixed_abs, tag = 'smem constant byte address 0x4 - core index']
  #allocation1 [shape = 'u32[144,128]{1,0:T(1,128)}', space=vmem, size = 0x12000, scoped, tag = 'internal scratch']
  %s0 = inlined_call_operand.vmem [shape: f32[128,128], index: 0, kind: input, shape index: {}]
  %s1 = inlined_call_operand.vmem [shape: f32[128,128], index: 1, kind: input, shape index: {}]
  %s2 = inlined_call_operand.vmem [shape: f32[1,128], index: 2, kind: input, shape index: {}]
  %s3 = inlined_call_operand.vmem [shape: f32[1,128], index: 3, kind: input, shape index: {}]
  %s4 = inlined_call_operand.vmem [shape: f32[128,128], index: 4, kind: input, shape index: {}]
  %s5 = inlined_call_operand.vmem [shape: f32[128,128], index: 5, kind: input, shape index: {}]
  %s6 = inlined_call_operand.vmem [shape: f32[1,128], index: 6, kind: input, shape index: {}]
  %s7 = inlined_call_operand.vmem [shape: f32[1,128], index: 7, kind: input, shape index: {}]
  %s8 = inlined_call_operand.vmem [shape: f32[128,128], index: 8, kind: output, shape index: {}]
  %s9 = sld [smem:[#allocation0]]
  $region65: #{basic_block_forward.3} parent=0
    _
  %s11 = ssub.s32 1, %s9
  %s12 = scalar_select 0, %s11, %s9
  loop: start=0, step=1, limit=4
  $region2: #{basic_block_forward.3} parent=0 // loop_pre_header
    _
  $region3: #{basic_block_forward.3} parent=0 // loop_header
    %s14 = sphi 0, %s18
    %p15 = scmp.ge.s32.totalorder %s14, 4
    %s24 = sphi 0, %s26
    %s27 = sphi 0, %s24
    %s28 = sphi 0, %s27
    %s44 = sphi 0, %s28
    %s48 = sphi 0, %s48
    %s50 = sphi 0, %s48
    %s51 = sphi 0, %s50
    %s65 = sphi 0, %s51
    %s69 = sphi 0, %s69
    %s71 = sphi 0, %s69
    %s72 = sphi 0, %s71
    %s86 = sphi 0, %s72
    %s90 = sphi 0, %s90
    %s92 = sphi 0, %s90
    %s93 = sphi 0, %s92
    %s107 = sphi 0, %s93
    %s113 = sphi 0, %s115
    %s116 = sphi 0, %s113
    %s117 = sphi 0, %s116
    %s133 = sphi 0, %s117
    %s137 = sphi 0, %s137
    %s139 = sphi 0, %s137
    %s140 = sphi 0, %s139
    %s154 = sphi 0, %s140
    %s158 = sphi 0, %s158
    %s160 = sphi 0, %s158
    %s161 = sphi 0, %s160
    %s175 = sphi 0, %s161
    %s179 = sphi 0, %s179
    %s181 = sphi 0, %s179
    %s182 = sphi 0, %s181
    %s196 = sphi 0, %s182
    %s202 = sphi 0, %s204
    %s205 = sphi 0, %s202
    %s206 = sphi 0, %s205
    %s222 = sphi 0, %s206
  $region4: #{basic_block_forward.3} parent=0 // loop_header_branch
    %17 = sbr.rel (%p15) target = $region8
  $region5: #{basic_block_forward.3} parent=0 // loop_body
    %s19 = ssub.s32 %s14, 1
    %s20 = ssub.s32 %s14, 2
    %s21 = sadd.s32 %s14, 1
    %s22 = ssub.s32 %s14, %s21
    %p23 = scmp.eq.s32.totalorder %s22, 0
    %s25 = sadd.s32 %s24, 1
    %s26 = scalar_select %p23, %s24, %s25
    %p29 = pneg %p23
    %p30 = scmp.eq.s32.totalorder %s14, 1
    %p31 = por %p29, %p30
    %p32 = scmp.ne.s32.totalorder %s24, %s27
    %p33 = scmp.eq.s32.totalorder %s14, 0
    %p34 = por %p32, %p33
    %p35 = scmp.ne.s32.totalorder %s24, %s27
    %p36 = scmp.eq.s32.totalorder %s19, 1
    %p37 = por %p35, %p36
    %p38 = scmp.ne.s32.totalorder %s27, %s28
    %p39 = scmp.eq.s32.totalorder %s19, 0
    %p40 = por %p38, %p39
    %p41 = scmp.ne.s32.totalorder %s27, %s28
    %p42 = scmp.eq.s32.totalorder %s20, 1
    %p43 = por %p41, %p42
    %p45 = scmp.ne.s32.totalorder %s28, %s44
    %p46 = scmp.eq.s32.totalorder %s20, 0
    %p47 = por %p45, %p46
    %s49 = sadd.s32 %s48, 1
    %p52 = scmp.eq.s32.totalorder %s14, 1
    %p53 = scmp.ne.s32.totalorder %s48, %s50
    %p54 = scmp.eq.s32.totalorder %s14, 0
    %p55 = por %p53, %p54
    %p56 = scmp.ne.s32.totalorder %s48, %s50
    %p57 = scmp.eq.s32.totalorder %s19, 1
    %p58 = por %p56, %p57
    %p59 = scmp.ne.s32.totalorder %s50, %s51
    %p60 = scmp.eq.s32.totalorder %s19, 0
    %p61 = por %p59, %p60
    %p62 = scmp.ne.s32.totalorder %s50, %s51
    %p63 = scmp.eq.s32.totalorder %s20, 1
    %p64 = por %p62, %p63
    %p66 = scmp.ne.s32.totalorder %s51, %s65
    %p67 = scmp.eq.s32.totalorder %s20, 0
    %p68 = por %p66, %p67
    %s70 = sadd.s32 %s69, 1
    %p73 = scmp.eq.s32.totalorder %s14, 1
    %p74 = scmp.ne.s32.totalorder %s69, %s71
    %p75 = scmp.eq.s32.totalorder %s14, 0
    %p76 = por %p74, %p75
    %p77 = scmp.ne.s32.totalorder %s69, %s71
    %p78 = scmp.eq.s32.totalorder %s19, 1
    %p79 = por %p77, %p78
    %p80 = scmp.ne.s32.totalorder %s71, %s72
    %p81 = scmp.eq.s32.totalorder %s19, 0
    %p82 = por %p80, %p81
    %p83 = scmp.ne.s32.totalorder %s71, %s72
    %p84 = scmp.eq.s32.totalorder %s20, 1
    %p85 = por %p83, %p84
    %p87 = scmp.ne.s32.totalorder %s72, %s86
    %p88 = scmp.eq.s32.totalorder %s20, 0
    %p89 = por %p87, %p88
    %s91 = sadd.s32 %s90, 1
    %p94 = scmp.eq.s32.totalorder %s14, 1
    %p95 = scmp.ne.s32.totalorder %s90, %s92
    %p96 = scmp.eq.s32.totalorder %s14, 0
    %p97 = por %p95, %p96
    %p98 = scmp.ne.s32.totalorder %s90, %s92
    %p99 = scmp.eq.s32.totalorder %s19, 1
    %p100 = por %p98, %p99
    %p101 = scmp.ne.s32.totalorder %s92, %s93
    %p102 = scmp.eq.s32.totalorder %s19, 0
    %p103 = por %p101, %p102
    %p104 = scmp.ne.s32.totalorder %s92, %s93
    %p105 = scmp.eq.s32.totalorder %s20, 1
    %p106 = por %p104, %p105
    %p108 = scmp.ne.s32.totalorder %s93, %s107
    %p109 = scmp.eq.s32.totalorder %s20, 0
    %p110 = por %p108, %p109
    %s111 = ssub.s32 %s14, %s21
    %p112 = scmp.eq.s32.totalorder %s111, 0
    %s114 = sadd.s32 %s113, 1
    %s115 = scalar_select %p112, %s113, %s114
    %p118 = pneg %p112
    %p119 = scmp.eq.s32.totalorder %s14, 1
    %p120 = por %p118, %p119
    %p121 = scmp.ne.s32.totalorder %s113, %s116
    %p122 = scmp.eq.s32.totalorder %s14, 0
    %p123 = por %p121, %p122
    %p124 = scmp.ne.s32.totalorder %s113, %s116
    %p125 = scmp.eq.s32.totalorder %s19, 1
    %p126 = por %p124, %p125
    %p127 = scmp.ne.s32.totalorder %s116, %s117
    %p128 = scmp.eq.s32.totalorder %s19, 0
    %p129 = por %p127, %p128
    %p130 = scmp.ne.s32.totalorder %s116, %s117
    %p131 = scmp.eq.s32.totalorder %s20, 1
    %p132 = por %p130, %p131
    %p134 = scmp.ne.s32.totalorder %s117, %s133
    %p135 = scmp.eq.s32.totalorder %s20, 0
    %p136 = por %p134, %p135
    %s138 = sadd.s32 %s137, 1
    %p141 = scmp.eq.s32.totalorder %s14, 1
    %p142 = scmp.ne.s32.totalorder %s137, %s139
    %p143 = scmp.eq.s32.totalorder %s14, 0
    %p144 = por %p142, %p143
    %p145 = scmp.ne.s32.totalorder %s137, %s139
    %p146 = scmp.eq.s32.totalorder %s19, 1
    %p147 = por %p145, %p146
    %p148 = scmp.ne.s32.totalorder %s139, %s140
    %p149 = scmp.eq.s32.totalorder %s19, 0
    %p150 = por %p148, %p149
    %p151 = scmp.ne.s32.totalorder %s139, %s140
    %p152 = scmp.eq.s32.totalorder %s20, 1
    %p153 = por %p151, %p152
    %p155 = scmp.ne.s32.totalorder %s140, %s154
    %p156 = scmp.eq.s32.totalorder %s20, 0
    %p157 = por %p155, %p156
    %s159 = sadd.s32 %s158, 1
    %p162 = scmp.eq.s32.totalorder %s14, 1
    %p163 = scmp.ne.s32.totalorder %s158, %s160
    %p164 = scmp.eq.s32.totalorder %s14, 0
    %p165 = por %p163, %p164
    %p166 = scmp.ne.s32.totalorder %s158, %s160
    %p167 = scmp.eq.s32.totalorder %s19, 1
    %p168 = por %p166, %p167
    %p169 = scmp.ne.s32.totalorder %s160, %s161
    %p170 = scmp.eq.s32.totalorder %s19, 0
    %p171 = por %p169, %p170
    %p172 = scmp.ne.s32.totalorder %s160, %s161
    %p173 = scmp.eq.s32.totalorder %s20, 1
    %p174 = por %p172, %p173
    %p176 = scmp.ne.s32.totalorder %s161, %s175
    %p177 = scmp.eq.s32.totalorder %s20, 0
    %p178 = por %p176, %p177
    %s180 = sadd.s32 %s179, 1
    %p183 = scmp.eq.s32.totalorder %s14, 1
    %p184 = scmp.ne.s32.totalorder %s179, %s181
    %p185 = scmp.eq.s32.totalorder %s14, 0
    %p186 = por %p184, %p185
    %p187 = scmp.ne.s32.totalorder %s179, %s181
    %p188 = scmp.eq.s32.totalorder %s19, 1
    %p189 = por %p187, %p188
    %p190 = scmp.ne.s32.totalorder %s181, %s182
    %p191 = scmp.eq.s32.totalorder %s19, 0
    %p192 = por %p190, %p191
    %p193 = scmp.ne.s32.totalorder %s181, %s182
    %p194 = scmp.eq.s32.totalorder %s20, 1
    %p195 = por %p193, %p194
    %p197 = scmp.ne.s32.totalorder %s182, %s196
    %p198 = scmp.eq.s32.totalorder %s20, 0
    %p199 = por %p197, %p198
    %s200 = ssub.s32 %s14, %s21
    %p201 = scmp.eq.s32.totalorder %s200, 0
    %s203 = sadd.s32 %s202, 1
    %s204 = scalar_select %p201, %s202, %s203
    %p207 = pneg %p201
    %p208 = scmp.eq.s32.totalorder %s14, 1
    %p209 = por %p207, %p208
    %p210 = scmp.ne.s32.totalorder %s202, %s205
    %p211 = scmp.eq.s32.totalorder %s14, 0
    %p212 = por %p210, %p211
    %p213 = scmp.ne.s32.totalorder %s202, %s205
    %p214 = scmp.eq.s32.totalorder %s19, 1
    %p215 = por %p213, %p214
    %p216 = scmp.ne.s32.totalorder %s205, %s206
    %p217 = scmp.eq.s32.totalorder %s19, 0
    %p218 = por %p216, %p217
    %p219 = scmp.ne.s32.totalorder %s205, %s206
    %p220 = scmp.eq.s32.totalorder %s20, 1
    %p221 = por %p219, %p220
    %p223 = scmp.ne.s32.totalorder %s206, %s222
    %p224 = scmp.eq.s32.totalorder %s20, 0
    %p225 = por %p223, %p224
    %p226 = scmp.le.s32.totalorder 1, %s14
    %p227 = scmp.lt.s32.totalorder %s14, 3
    %p228 = pnand %p226, %p227
    %p229 = pneg %p228
    // Predicated region
    $region9: #{basic_block_forward.3} parent=5 // pred_check
      _
    $region10: #{basic_block_forward.3} parent=5 // pred_check_branch
      %231 = sbr.rel (%p228) target = $region12
    $region11: #{basic_block_forward.3} parent=5 // pred_region
      %s232 = ssub.s32 %s14, 1
      // Predicated region
      $region13: #{basic_block_forward.3} parent=11 // pred_check
        %p233 = pneg %p61
      $region14: #{basic_block_forward.3} parent=11 // pred_check_branch
        %235 = sbr.rel (%p233) target = $region16
      $region15: #{basic_block_forward.3} parent=11 // pred_region
        _
      $region16: #{basic_block_forward.3} parent=11 // pred_fallthru
        _
      // Predicated region
      $region17: #{basic_block_forward.3} parent=11 // pred_check
        %p236 = pneg %p82
      $region18: #{basic_block_forward.3} parent=11 // pred_check_branch
        %238 = sbr.rel (%p236) target = $region20
      $region19: #{basic_block_forward.3} parent=11 // pred_region
        _
      $region20: #{basic_block_forward.3} parent=11 // pred_fallthru
        _
      // Predicated region
      $region21: #{basic_block_forward.3} parent=11 // pred_check
        %p239 = pneg %p103
      $region22: #{basic_block_forward.3} parent=11 // pred_check_branch
        %241 = sbr.rel (%p239) target = $region24
      $region23: #{basic_block_forward.3} parent=11 // pred_region
        _
      $region24: #{basic_block_forward.3} parent=11 // pred_fallthru
        _
      // Predicated region
      $region25: #{basic_block_forward.3} parent=11 // pred_check
        %p242 = pneg %p150
      $region26: #{basic_block_forward.3} parent=11 // pred_check_branch
        %244 = sbr.rel (%p242) target = $region28
      $region27: #{basic_block_forward.3} parent=11 // pred_region
        _
      $region28: #{basic_block_forward.3} parent=11 // pred_fallthru
        _
      // Predicated region
      $region29: #{basic_block_forward.3} parent=11 // pred_check
        %p245 = pneg %p171
      $region30: #{basic_block_forward.3} parent=11 // pred_check_branch
        %247 = sbr.rel (%p245) target = $region32
      $region31: #{basic_block_forward.3} parent=11 // pred_region
        _
      $region32: #{basic_block_forward.3} parent=11 // pred_fallthru
        _
      // Predicated region
      $region33: #{basic_block_forward.3} parent=11 // pred_check
        %p248 = pneg %p192
      $region34: #{basic_block_forward.3} parent=11 // pred_check_branch
        %250 = sbr.rel (%p248) target = $region36
      $region35: #{basic_block_forward.3} parent=11 // pred_region
        _
      $region36: #{basic_block_forward.3} parent=11 // pred_fallthru
        _
    $region12: #{basic_block_forward.3} parent=5 // pred_fallthru
      _
    %p251 = scmp.lt.s32.totalorder %s14, 2
    // Predicated region
    $region37: #{basic_block_forward.3} parent=5 // pred_check
      %p252 = pneg %p251
    $region38: #{basic_block_forward.3} parent=5 // pred_check_branch
      %254 = sbr.rel (%p252) target = $region40
    $region39: #{basic_block_forward.3} parent=5 // pred_region
      // Predicated region
      $region41: #{basic_block_forward.3} parent=39 // pred_check
        %p255 = pneg %p34
      $region42: #{basic_block_forward.3} parent=39 // pred_check_branch
        %257 = sbr.rel (%p255) target = $region44
      $region43: #{basic_block_forward.3} parent=39 // pred_region
        %s258 = smul.u32 8, %s14
        %p259 = scmp.lt.s32.totalorder %s258, 15
        %s260 = scalar_select %p259, %s258, 15
        %s261 = smul.addr %s260, 8
        %s262 = scalar_lea.vmem %s0, %s261
        %s263 = smul.u32 8, %s14
      $region44: #{basic_block_forward.3} parent=39 // pred_fallthru
        _
      // Predicated region
      $region45: #{basic_block_forward.3} parent=39 // pred_check
        %p264 = pneg %p123
      $region46: #{basic_block_forward.3} parent=39 // pred_check_branch
        %266 = sbr.rel (%p264) target = $region48
      $region47: #{basic_block_forward.3} parent=39 // pred_region
        %s267 = smul.u32 8, %s14
        %p268 = scmp.lt.s32.totalorder %s267, 15
        %s269 = scalar_select %p268, %s267, 15
        %s270 = smul.addr %s269, 8
        %s271 = scalar_lea.vmem %s4, %s270
        %s272 = smul.u32 8, %s14
      $region48: #{basic_block_forward.3} parent=39 // pred_fallthru
        _
    $region40: #{basic_block_forward.3} parent=5 // pred_fallthru
      _
    %p273 = scmp.le.s32.totalorder 1, %s14
    %p274 = scmp.lt.s32.totalorder %s14, 3
    %p275 = pnand %p273, %p274
    %p276 = pneg %p275
    // Predicated region
    $region49: #{basic_block_forward.3} parent=5 // pred_check
      _
    $region50: #{basic_block_forward.3} parent=5 // pred_check_branch
      %278 = sbr.rel (%p275) target = $region52
    $region51: #{basic_block_forward.3} parent=5 // pred_region
      %s279 = ssub.s32 %s14, 1
      %s280 = smul.u32 8, %s19
      %p281 = scmp.lt.s32.totalorder %s280, 15
      %s282 = scalar_select %p281, %s280, 15
      %s283 = smul.addr %s282, 8
      %s284 = scalar_lea.vmem %s0, %s283
      %p285 = pneg %p40
      %p286 = pneg %p37
      %p287 = pneg %p61
      %p288 = pneg %p58
      %p289 = pneg %p82
      %p290 = pneg %p79
      %p291 = pneg %p103
      %p292 = pneg %p100
      %s293 = smul.u32 8, %s19
      %p294 = scmp.lt.s32.totalorder %s293, 15
      %s295 = scalar_select %p294, %s293, 15
      %s296 = smul.addr %s295, 8
      %s297 = scalar_lea.vmem %s4, %s296
      %p298 = pneg %p129
      %p299 = pneg %p126
      %p300 = pneg %p150
      %p301 = pneg %p147
      %p302 = pneg %p171
      %p303 = pneg %p168
      %p304 = pneg %p192
      %p305 = pneg %p189
      %p306 = pneg %p218
      %p307 = pneg %p215
      %s308 = smul.u32 8, %s19
      %p309 = scmp.lt.s32.totalorder %s308, 15
      %s310 = scalar_select %p309, %s308, 15
      %s311 = smul.addr %s310, 8
      %s312 = scalar_lea.vmem %s8, %s311
      %s313 = smul.u32 8, %s19
      %p314 = scmp.lt.s32.totalorder %s313, 15
      %s315 = scalar_select %p314, %s313, 15
      %s316 = smul.addr %s315, 8
      %s317 = scalar_lea.vmem %s0, %s316
      %s318 = smul.u32 8, %s19
      %s319 = smul.u32 8, %s19
      %p320 = scmp.lt.s32.totalorder %s319, 15
      %s321 = scalar_select %p320, %s319, 15
      %s322 = smul.addr %s321, 8
      %s323 = scalar_lea.vmem %s4, %s322
      %s324 = smul.u32 8, %s19
      %s325 = smul.u32 8, %s19
      %p326 = scmp.lt.s32.totalorder %s325, 15
      %s327 = scalar_select %p326, %s325, 15
      %s328 = smul.addr %s327, 8
      %s329 = scalar_lea.vmem %s8, %s328
      %s330 = smul.u32 8, %s19
      %v331 = vld [vmem:[%s317] sm:$0xff]
      %v332 = vld [vmem:[%s317 + $0x8] sm:$0xff]
      %v333 = vld [vmem:[%s317 + $0x10] sm:$0xff]
      %v334 = vld [vmem:[%s317 + $0x18] sm:$0xff]
      %v335 = vld [vmem:[%s317 + $0x20] sm:$0xff]
      %v336 = vld [vmem:[%s317 + $0x28] sm:$0xff]
      %v337 = vld [vmem:[%s317 + $0x30] sm:$0xff]
      %v338 = vld [vmem:[%s317 + $0x38] sm:$0xff]
      %v339 = vld [vmem:[%s1] sm:$0xff]
      %v340 = vld [vmem:[%s1 + $0x8] sm:$0xff]
      %v341 = vld [vmem:[%s1 + $0x10] sm:$0xff]
      %v342 = vld [vmem:[%s1 + $0x18] sm:$0xff]
      %v343 = vld [vmem:[%s1 + $0x20] sm:$0xff]
      %v344 = vld [vmem:[%s1 + $0x28] sm:$0xff]
      %v345 = vld [vmem:[%s1 + $0x30] sm:$0xff]
      %v346 = vld [vmem:[%s1 + $0x38] sm:$0xff]
      %v347 = vld [vmem:[%s1 + $0x40] sm:$0xff]
      %v348 = vld [vmem:[%s1 + $0x48] sm:$0xff]
      %v349 = vld [vmem:[%s1 + $0x50] sm:$0xff]
      %v350 = vld [vmem:[%s1 + $0x58] sm:$0xff]
      %v351 = vld [vmem:[%s1 + $0x60] sm:$0xff]
      %v352 = vld [vmem:[%s1 + $0x68] sm:$0xff]
      %v353 = vld [vmem:[%s1 + $0x70] sm:$0xff]
      %v354 = vld [vmem:[%s1 + $0x78] sm:$0xff]
      %355 = vmatprep.subr.mxu0 0.0
      %356 = vmatpush1.msra.mxu0 %v354
      %357 = vmatprep.subr.mxu0 0.0
      %358 = vmatpush1.msra.mxu0 %v353
      %359 = vmatprep.subr.mxu0 0.0
      %360 = vmatpush1.msra.mxu0 %v352
      %361 = vmatprep.subr.mxu0 0.0
      %362 = vmatpush1.msra.mxu0 %v351
      %363 = vmatprep.subr.mxu0 0.0
      %364 = vmatpush1.msra.mxu0 %v350
      %365 = vmatprep.subr.mxu0 0.0
      %366 = vmatpush1.msra.mxu0 %v349
      %367 = vmatprep.subr.mxu0 0.0
      %368 = vmatpush1.msra.mxu0 %v348
      %369 = vmatprep.subr.mxu0 0.0
      %370 = vmatpush1.msra.mxu0 %v347
      %371 = vmatprep.subr.mxu0 0.0
      %372 = vmatpush1.msra.mxu0 %v346
      %373 = vmatprep.subr.mxu0 0.0
      %374 = vmatpush1.msra.mxu0 %v345
      %375 = vmatprep.subr.mxu0 0.0
      %376 = vmatpush1.msra.mxu0 %v344
      %377 = vmatprep.subr.mxu0 0.0
      %378 = vmatpush1.msra.mxu0 %v343
      %379 = vmatprep.subr.mxu0 0.0
      %380 = vmatpush1.msra.mxu0 %v342
      %381 = vmatprep.subr.mxu0 0.0
      %382 = vmatpush1.msra.mxu0 %v341
      %383 = vmatprep.subr.mxu0 0.0
      %384 = vmatpush1.msra.mxu0 %v340
      %385 = vmatprep.subr.mxu0 0.0
      %386 = vmatpush1.msra.mxu0 %v339
      %387 = vmatprep.subr.mxu0 0.0
      %388 = vmatpush2.msra.mxu0 0.0
      %389 = vmatprep.subr.mxu0 0.0
      %390 = vmatpush2.msra.mxu0 0.0
      %391 = vmatprep.subr.mxu0 0.0
      %392 = vmatpush2.msra.mxu0 0.0
      %393 = vmatprep.subr.mxu0 0.0
      %394 = vmatpush2.msra.mxu0 0.0
      %395 = vmatprep.subr.mxu0 0.0
      %396 = vmatpush2.msra.mxu0 0.0
      %397 = vmatprep.subr.mxu0 0.0
      %398 = vmatpush2.msra.mxu0 0.0
      %399 = vmatprep.subr.mxu0 0.0
      %400 = vmatpush2.msra.mxu0 0.0
      %401 = vmatprep.subr.mxu0 0.0
      %402 = vmatpush2.msra.mxu0 0.0
      %403 = vmatprep.subr.mxu0 0.0
      %404 = vmatpush2.msra.mxu0 0.0
      %405 = vmatprep.subr.mxu0 0.0
      %406 = vmatpush2.msra.mxu0 0.0
      %407 = vmatprep.subr.mxu0 0.0
      %408 = vmatpush2.msra.mxu0 0.0
      %409 = vmatprep.subr.mxu0 0.0
      %410 = vmatpush2.msra.mxu0 0.0
      %411 = vmatprep.subr.mxu0 0.0
      %412 = vmatpush2.msra.mxu0 0.0
      %413 = vmatprep.subr.mxu0 0.0
      %414 = vmatpush2.msra.mxu0 0.0
      %415 = vmatprep.subr.mxu0 0.0
      %416 = vmatpush2.msra.mxu0 0.0
      %417 = vmatprep.subr.mxu0 0.0
      %418 = vmatpush2.msra.mxu0 0.0
      %419 = vmatprep.mubr.f32.mxu0 0.0
      %420 = vmatmul.mubr.f32.gmra.mxu0 %v331
      %v421 = vpop.f32.mrf.mxu0
      %v422 = vadd.f32 0.0, %v421
      %v423 = vpop.f32.mrf.mxu0
      %424 = vmatprep.mubr.f32.mxu0 0.0
      %425 = vmatmul.mubr.f32.gmra.mxu0 %v332
      %v426 = vpop.f32.mrf.mxu0
      %v427 = vadd.f32 0.0, %v426
      %v428 = vpop.f32.mrf.mxu0
      %429 = vmatprep.mubr.f32.mxu0 0.0
      %430 = vmatmul.mubr.f32.gmra.mxu0 %v333
      %v431 = vpop.f32.mrf.mxu0
      %v432 = vadd.f32 0.0, %v431
      %v433 = vpop.f32.mrf.mxu0
      %434 = vmatprep.mubr.f32.mxu0 0.0
      %435 = vmatmul.mubr.f32.gmra.mxu0 %v334
      %v436 = vpop.f32.mrf.mxu0
      %v437 = vadd.f32 0.0, %v436
      %v438 = vpop.f32.mrf.mxu0
      %439 = vmatprep.mubr.f32.mxu0 0.0
      %440 = vmatmul.mubr.f32.gmra.mxu0 %v335
      %v441 = vpop.f32.mrf.mxu0
      %v442 = vadd.f32 0.0, %v441
      %v443 = vpop.f32.mrf.mxu0
      %444 = vmatprep.mubr.f32.mxu0 0.0
      %445 = vmatmul.mubr.f32.gmra.mxu0 %v336
      %v446 = vpop.f32.mrf.mxu0
      %v447 = vadd.f32 0.0, %v446
      %v448 = vpop.f32.mrf.mxu0
      %449 = vmatprep.mubr.f32.mxu0 0.0
      %450 = vmatmul.mubr.f32.gmra.mxu0 %v337
      %v451 = vpop.f32.mrf.mxu0
      %v452 = vadd.f32 0.0, %v451
      %v453 = vpop.f32.mrf.mxu0
      %454 = vmatprep.mubr.f32.mxu0 0.0
      %455 = vmatmul.mubr.f32.gmra.mxu0 %v338
      %v456 = vpop.f32.mrf.mxu0
      %v457 = vadd.f32 0.0, %v456
      %v458 = vpop.f32.mrf.mxu0
      %459 = vdwg.mxu0
      %v460 = vld [vmem:[%s2] sm:$0x1]
      %v462 = vlaneseq
      %v463 = vshrl.u32 %v462, 7
      %v464 = vsub.s32 0, %v463
      %v465 = vrot.slane %v460, %v464
      %v467 = vmul.f32 %v422, %v465
      %v468 = vmul.f32 %v427, %v465
      %v469 = vmul.f32 %v432, %v465
      %v470 = vmul.f32 %v437, %v465
      %v471 = vmul.f32 %v442, %v465
      %v472 = vmul.f32 %v447, %v465
      %v473 = vmul.f32 %v452, %v465
      %v474 = vmul.f32 %v457, %v465
      %v475 = vld [vmem:[%s3] sm:$0x1]
      %v477 = vlaneseq
      %v478 = vshrl.u32 %v477, 7
      %v479 = vsub.s32 0, %v478
      %v480 = vrot.slane %v475, %v479
      %v482 = vadd.f32 %v467, %v480
      %v483 = vadd.f32 %v468, %v480
      %v484 = vadd.f32 %v469, %v480
      %v485 = vadd.f32 %v470, %v480
      %v486 = vadd.f32 %v471, %v480
      %v487 = vadd.f32 %v472, %v480
      %v488 = vadd.f32 %v473, %v480
      %v489 = vadd.f32 %v474, %v480
      %v490 = vld [vmem:[%s323] sm:$0xff]
      %v491 = vld [vmem:[%s323 + $0x8] sm:$0xff]
      %v492 = vld [vmem:[%s323 + $0x10] sm:$0xff]
      %v493 = vld [vmem:[%s323 + $0x18] sm:$0xff]
      %v494 = vld [vmem:[%s323 + $0x20] sm:$0xff]
      %v495 = vld [vmem:[%s323 + $0x28] sm:$0xff]
      %v496 = vld [vmem:[%s323 + $0x30] sm:$0xff]
      %v497 = vld [vmem:[%s323 + $0x38] sm:$0xff]
      %v498 = vld [vmem:[%s5] sm:$0xff]
      %v499 = vld [vmem:[%s5 + $0x8] sm:$0xff]
      %v500 = vld [vmem:[%s5 + $0x10] sm:$0xff]
      %v501 = vld [vmem:[%s5 + $0x18] sm:$0xff]
      %v502 = vld [vmem:[%s5 + $0x20] sm:$0xff]
      %v503 = vld [vmem:[%s5 + $0x28] sm:$0xff]
      %v504 = vld [vmem:[%s5 + $0x30] sm:$0xff]
      %v505 = vld [vmem:[%s5 + $0x38] sm:$0xff]
      %v506 = vld [vmem:[%s5 + $0x40] sm:$0xff]
      %v507 = vld [vmem:[%s5 + $0x48] sm:$0xff]
      %v508 = vld [vmem:[%s5 + $0x50] sm:$0xff]
      %v509 = vld [vmem:[%s5 + $0x58] sm:$0xff]
      %v510 = vld [vmem:[%s5 + $0x60] sm:$0xff]
      %v511 = vld [vmem:[%s5 + $0x68] sm:$0xff]
      %v512 = vld [vmem:[%s5 + $0x70] sm:$0xff]
      %v513 = vld [vmem:[%s5 + $0x78] sm:$0xff]
      %514 = vmatprep.subr.mxu0 0.0
      %515 = vmatpush1.msra.mxu0 %v513
      %516 = vmatprep.subr.mxu0 0.0
      %517 = vmatpush1.msra.mxu0 %v512
      %518 = vmatprep.subr.mxu0 0.0
      %519 = vmatpush1.msra.mxu0 %v511
      %520 = vmatprep.subr.mxu0 0.0
      %521 = vmatpush1.msra.mxu0 %v510
      %522 = vmatprep.subr.mxu0 0.0
      %523 = vmatpush1.msra.mxu0 %v509
      %524 = vmatprep.subr.mxu0 0.0
      %525 = vmatpush1.msra.mxu0 %v508
      %526 = vmatprep.subr.mxu0 0.0
      %527 = vmatpush1.msra.mxu0 %v507
      %528 = vmatprep.subr.mxu0 0.0
      %529 = vmatpush1.msra.mxu0 %v506
      %530 = vmatprep.subr.mxu0 0.0
      %531 = vmatpush1.msra.mxu0 %v505
      %532 = vmatprep.subr.mxu0 0.0
      %533 = vmatpush1.msra.mxu0 %v504
      %534 = vmatprep.subr.mxu0 0.0
      %535 = vmatpush1.msra.mxu0 %v503
      %536 = vmatprep.subr.mxu0 0.0
      %537 = vmatpush1.msra.mxu0 %v502
      %538 = vmatprep.subr.mxu0 0.0
      %539 = vmatpush1.msra.mxu0 %v501
      %540 = vmatprep.subr.mxu0 0.0
      %541 = vmatpush1.msra.mxu0 %v500
      %542 = vmatprep.subr.mxu0 0.0
      %543 = vmatpush1.msra.mxu0 %v499
      %544 = vmatprep.subr.mxu0 0.0
      %545 = vmatpush1.msra.mxu0 %v498
      %546 = vmatprep.subr.mxu0 0.0
      %547 = vmatpush2.msra.mxu0 0.0
      %548 = vmatprep.subr.mxu0 0.0
      %549 = vmatpush2.msra.mxu0 0.0
      %550 = vmatprep.subr.mxu0 0.0
      %551 = vmatpush2.msra.mxu0 0.0
      %552 = vmatprep.subr.mxu0 0.0
      %553 = vmatpush2.msra.mxu0 0.0
      %554 = vmatprep.subr.mxu0 0.0
      %555 = vmatpush2.msra.mxu0 0.0
      %556 = vmatprep.subr.mxu0 0.0
      %557 = vmatpush2.msra.mxu0 0.0
      %558 = vmatprep.subr.mxu0 0.0
      %559 = vmatpush2.msra.mxu0 0.0
      %560 = vmatprep.subr.mxu0 0.0
      %561 = vmatpush2.msra.mxu0 0.0
      %562 = vmatprep.subr.mxu0 0.0
      %563 = vmatpush2.msra.mxu0 0.0
      %564 = vmatprep.subr.mxu0 0.0
      %565 = vmatpush2.msra.mxu0 0.0
      %566 = vmatprep.subr.mxu0 0.0
      %567 = vmatpush2.msra.mxu0 0.0
      %568 = vmatprep.subr.mxu0 0.0
      %569 = vmatpush2.msra.mxu0 0.0
      %570 = vmatprep.subr.mxu0 0.0
      %571 = vmatpush2.msra.mxu0 0.0
      %572 = vmatprep.subr.mxu0 0.0
      %573 = vmatpush2.msra.mxu0 0.0
      %574 = vmatprep.subr.mxu0 0.0
      %575 = vmatpush2.msra.mxu0 0.0
      %576 = vmatprep.subr.mxu0 0.0
      %577 = vmatpush2.msra.mxu0 0.0
      %578 = vmatprep.mubr.f32.mxu0 0.0
      %579 = vmatmul.mubr.f32.gmra.mxu0 %v490
      %v580 = vpop.f32.mrf.mxu0
      %v581 = vadd.f32 0.0, %v580
      %v582 = vpop.f32.mrf.mxu0
      %583 = vmatprep.mubr.f32.mxu0 0.0
      %584 = vmatmul.mubr.f32.gmra.mxu0 %v491
      %v585 = vpop.f32.mrf.mxu0
      %v586 = vadd.f32 0.0, %v585
      %v587 = vpop.f32.mrf.mxu0
      %588 = vmatprep.mubr.f32.mxu0 0.0
      %589 = vmatmul.mubr.f32.gmra.mxu0 %v492
      %v590 = vpop.f32.mrf.mxu0
      %v591 = vadd.f32 0.0, %v590
      %v592 = vpop.f32.mrf.mxu0
      %593 = vmatprep.mubr.f32.mxu0 0.0
      %594 = vmatmul.mubr.f32.gmra.mxu0 %v493
      %v595 = vpop.f32.mrf.mxu0
      %v596 = vadd.f32 0.0, %v595
      %v597 = vpop.f32.mrf.mxu0
      %598 = vmatprep.mubr.f32.mxu0 0.0
      %599 = vmatmul.mubr.f32.gmra.mxu0 %v494
      %v600 = vpop.f32.mrf.mxu0
      %v601 = vadd.f32 0.0, %v600
      %v602 = vpop.f32.mrf.mxu0
      %603 = vmatprep.mubr.f32.mxu0 0.0
      %604 = vmatmul.mubr.f32.gmra.mxu0 %v495
      %v605 = vpop.f32.mrf.mxu0
      %v606 = vadd.f32 0.0, %v605
      %v607 = vpop.f32.mrf.mxu0
      %608 = vmatprep.mubr.f32.mxu0 0.0
      %609 = vmatmul.mubr.f32.gmra.mxu0 %v496
      %v610 = vpop.f32.mrf.mxu0
      %v611 = vadd.f32 0.0, %v610
      %v612 = vpop.f32.mrf.mxu0
      %613 = vmatprep.mubr.f32.mxu0 0.0
      %614 = vmatmul.mubr.f32.gmra.mxu0 %v497
      %v615 = vpop.f32.mrf.mxu0
      %v616 = vadd.f32 0.0, %v615
      %v617 = vpop.f32.mrf.mxu0
      %618 = vdwg.mxu0
      %v619 = vld [vmem:[%s6] sm:$0x1]
      %v621 = vlaneseq
      %v622 = vshrl.u32 %v621, 7
      %v623 = vsub.s32 0, %v622
      %v624 = vrot.slane %v619, %v623
      %v626 = vmul.f32 %v581, %v624
      %v627 = vmul.f32 %v586, %v624
      %v628 = vmul.f32 %v591, %v624
      %v629 = vmul.f32 %v596, %v624
      %v630 = vmul.f32 %v601, %v624
      %v631 = vmul.f32 %v606, %v624
      %v632 = vmul.f32 %v611, %v624
      %v633 = vmul.f32 %v616, %v624
      %v634 = vld [vmem:[%s7] sm:$0x1]
      %v636 = vlaneseq
      %v637 = vshrl.u32 %v636, 7
      %v638 = vsub.s32 0, %v637
      %v639 = vrot.slane %v634, %v638
      %v641 = vadd.f32 %v626, %v639
      %v642 = vadd.f32 %v627, %v639
      %v643 = vadd.f32 %v628, %v639
      %v644 = vadd.f32 %v629, %v639
      %v645 = vadd.f32 %v630, %v639
      %v646 = vadd.f32 %v631, %v639
      %v647 = vadd.f32 %v632, %v639
      %v648 = vadd.f32 %v633, %v639
      %v649 = vadd.f32 %v482, %v641
      %v650 = vadd.f32 %v483, %v642
      %v651 = vadd.f32 %v484, %v643
      %v652 = vadd.f32 %v485, %v644
      %v653 = vadd.f32 %v486, %v645
      %v654 = vadd.f32 %v487, %v646
      %v655 = vadd.f32 %v488, %v647
      %v656 = vadd.f32 %v489, %v648
      %v657 = vmax.f32 %v649, 0.0
      %v658 = vmax.f32 %v650, 0.0
      %v659 = vmax.f32 %v651, 0.0
      %v660 = vmax.f32 %v652, 0.0
      %v661 = vmax.f32 %v653, 0.0
      %v662 = vmax.f32 %v654, 0.0
      %v663 = vmax.f32 %v655, 0.0
      %v664 = vmax.f32 %v656, 0.0
      %665 = vst [vmem:[%s329] sm:$0xff] %v657
      %666 = vst [vmem:[%s329 + $0x8] sm:$0xff] %v658
      %667 = vst [vmem:[%s329 + $0x10] sm:$0xff] %v659
      %668 = vst [vmem:[%s329 + $0x18] sm:$0xff] %v660
      %669 = vst [vmem:[%s329 + $0x20] sm:$0xff] %v661
      %670 = vst [vmem:[%s329 + $0x28] sm:$0xff] %v662
      %671 = vst [vmem:[%s329 + $0x30] sm:$0xff] %v663
      %672 = vst [vmem:[%s329 + $0x38] sm:$0xff] %v664
      %s673 = smul.u32 8, %s19
      %p674 = scmp.lt.s32.totalorder %s673, 15
      %s675 = scalar_select %p674, %s673, 15
      %s676 = smul.addr %s675, 8
      %s677 = scalar_lea.vmem %s8, %s676
      // Predicated region
      $region53: #{basic_block_forward.3} parent=51 // pred_check
        %p678 = pneg %p215
      $region54: #{basic_block_forward.3} parent=51 // pred_check_branch
        %680 = sbr.rel (%p678) target = $region56
      $region55: #{basic_block_forward.3} parent=51 // pred_region
        %s681 = smul.u32 8, %s19
      $region56: #{basic_block_forward.3} parent=51 // pred_fallthru
        _
    $region52: #{basic_block_forward.3} parent=5 // pred_fallthru
      _
    %p682 = scmp.le.s32.totalorder 2, %s14
    // Predicated region
    $region57: #{basic_block_forward.3} parent=5 // pred_check
      %p683 = pneg %p682
    $region58: #{basic_block_forward.3} parent=5 // pred_check_branch
      %685 = sbr.rel (%p683) target = $region60
    $region59: #{basic_block_forward.3} parent=5 // pred_region
      %s686 = ssub.s32 %s14, 2
      // Predicated region
      $region61: #{basic_block_forward.3} parent=59 // pred_check
        %p687 = pneg %p221
      $region62: #{basic_block_forward.3} parent=59 // pred_check_branch
        %689 = sbr.rel (%p687) target = $region64
      $region63: #{basic_block_forward.3} parent=59 // pred_region
        %s690 = smul.u32 8, %s20
        %p691 = scmp.lt.s32.totalorder %s690, 15
        %s692 = scalar_select %p691, %s690, 15
        %s693 = smul.addr %s692, 8
        %s694 = scalar_lea.vmem %s8, %s693
      $region64: #{basic_block_forward.3} parent=59 // pred_fallthru
        _
    $region60: #{basic_block_forward.3} parent=5 // pred_fallthru
      _
  $region6: #{basic_block_forward.3} parent=0 // loop_footer
    %s18 = sadd.s32 1, %s14
  $region7: #{basic_block_forward.3} parent=0 // loop_footer_branch
    %13 = sbr.rel target = $region3
  $region8: #{basic_block_forward.3} parent=0 // loop_exit
    _

</llo_original>
